<compile_context>
chip_gen: v5e
topology: v5e:2x2
jax: 0.10.0
libtpu: 0.0.40
codegen_flags: <defaults>
</compile_context>

<pallas_src>
import functools
import math

import jax
import jax.numpy as jnp
from jax import lax
from jax.experimental import pallas as pl
from jax.experimental.pallas import tpu as pltpu

# ---- module hyper-parameters (consistent with the ConvCNP usage of MLP) ----
IN_CHANNELS = 4
OUT_CHANNELS = 3
HIDDEN_CHANNELS = 32
HIDDEN_LAYERS = 4

TM_MAX = 2048     # max lane-dense tile along the flattened batch/point axis


# ------------------------------ Pallas kernel -------------------------------
def _fused_mlp_kernel(x_ref, w_in_ref, w_hid_ref, w_out_ref, b_ref, o_ref,
                      *, n_hidden, matmul_dtype):
    """Whole MLP (in_to_hidden -> ReLU -> n_hidden ReLU layers -> out).

    x_ref:     (tile_m, c_in)              contiguous row block, f32
    w_in_ref:  (hidden, c_in)              first-layer weight, f32
    w_hid_ref: (n_hidden, hidden, hidden)  hidden weights, matmul_dtype
    w_out_ref: (c_out, hidden)             output weight, matmul_dtype
    b_ref:     (hidden, n_hidden + 2)      biases packed column-wise (zero pad)
    o_ref:     (c_out, tile_m)             lane-dense output slab
    """
    x = x_ref[...]                                           # (tile_m, c_in)

    # First layer: contract the (tiny, K=4) channel dim of both operands,
    # i.e. W_in @ x^T without materializing a transpose (Q @ K^T pattern).
    h = lax.dot_general(
        w_in_ref[...], x,
        dimension_numbers=(((1,), (1,)), ((), ())),
        preferred_element_type=jnp.float32)                  # (hidden, tile_m)
    h = jnp.maximum(h + b_ref[:, 0:1], 0.0)                  # ReLU

    # Hidden layers: canonical lane-dense matmuls, bf16 operands / f32 accum.
    for li in range(n_hidden):
        w = w_hid_ref[li]                                    # (hidden, hidden)
        y = jnp.dot(w, h.astype(matmul_dtype),
                    preferred_element_type=jnp.float32)
        h = jnp.maximum(y + b_ref[:, li + 1:li + 2], 0.0)

    # Output layer (no ReLU), lane-dense store.
    c_out = o_ref.shape[0]
    y = jnp.dot(w_out_ref[...], h.astype(matmul_dtype),
                preferred_element_type=jnp.float32)
    o_ref[...] = y + b_ref[:c_out, n_hidden + 1:n_hidden + 2]


# ------------------------------ wrapper / params -----------------------------
def init_mlp_params(key, in_channels, out_channels, hidden_channels,
                    hidden_layers):
    """PyTorch-style nn.Linear init: W ~ U(+-1/sqrt(fan_in)), shape (out, in)."""
    dims = [in_channels] + [hidden_channels] * (hidden_layers + 1) + [out_channels]
    keys = jax.random.split(key, len(dims) - 1)
    layers = []
    for k, fan_in, fan_out in zip(keys, dims[:-1], dims[1:]):
        kw, kb = jax.random.split(k)
        bound = 1.0 / math.sqrt(fan_in)
        w = jax.random.uniform(kw, (fan_out, fan_in), jnp.float32, -bound, bound)
        b = jax.random.uniform(kb, (fan_out,), jnp.float32, -bound, bound)
        layers.append((w, b))
    return layers


def _round_up(x, n):
    return ((x + n - 1) // n) * n


def _pick_tile(m, tm_max=TM_MAX):
    """Largest tile (multiple of 128, capped at tm_max) that keeps >=2 grid
    steps when m allows it (so the 'parallel' grid axis can use both v7x TCs)."""
    half = -(-m // 2)                               # cdiv(m, 2)
    return int(min(tm_max, max(128, _round_up(half, 128))))


def mlp_forward(layers, x, *, tile_m=None, matmul_dtype=jnp.bfloat16):
    """x: (..., in_channels) -> (..., out_channels), whole MLP in one kernel."""
    *lead, c_in = x.shape
    m = int(math.prod(lead)) if lead else 1

    n_layers = len(layers)
    n_hidden = n_layers - 2
    hidden = layers[0][0].shape[0]
    c_out = layers[-1][0].shape[0]

    if tile_m is None:
        tile_m = _pick_tile(m)
    m_pad = _round_up(max(m, tile_m), tile_m)

    # Contiguous (m_pad, c_in) rows; padded rows carry bias/ReLU garbage that
    # is sliced off after the kernel.
    x2 = x.reshape(m, c_in).astype(jnp.float32)
    if m_pad != m:
        x2 = jnp.pad(x2, ((0, m_pad - m), (0, 0)))

    # Pack all parameters into 4 grid-invariant inputs.
    w_in = layers[0][0].astype(jnp.float32)                        # (hidden, c_in)
    w_hid = jnp.stack([layers[1 + i][0] for i in range(n_hidden)]
                      ).astype(matmul_dtype)                       # (nh, hid, hid)
    w_out = layers[-1][0].astype(matmul_dtype)                     # (c_out, hidden)
    b_pack = jnp.stack(
        [jnp.pad(b.astype(jnp.float32), (0, hidden - b.shape[0]))
         for _, b in layers], axis=1)                              # (hidden, n_layers)

    kern = functools.partial(_fused_mlp_kernel, n_hidden=n_hidden,
                             matmul_dtype=matmul_dtype)
    out_t = pl.pallas_call(
        kern,
        out_shape=jax.ShapeDtypeStruct((c_out, m_pad), jnp.float32),
        grid=(m_pad // tile_m,),
        in_specs=[
            pl.BlockSpec((tile_m, c_in), lambda i: (i, 0)),              # x rows
            pl.BlockSpec((hidden, c_in), lambda i: (0, 0)),              # w_in
            pl.BlockSpec((n_hidden, hidden, hidden), lambda i: (0, 0, 0)),  # w_hid
            pl.BlockSpec((c_out, hidden), lambda i: (0, 0)),             # w_out
            pl.BlockSpec((hidden, n_layers), lambda i: (0, 0)),          # biases
        ],
        out_specs=pl.BlockSpec((c_out, tile_m), lambda i: (0, i)),
        compiler_params=pltpu.CompilerParams(
            dimension_semantics=("parallel",)),
    )(x2, w_in, w_hid, w_out, b_pack)

    out = out_t.T[:m]          # tiny (c_out, m) slab; cheap XLA re-layout
    return out.reshape(*lead, c_out)


# --------------------------- pure-JAX reference ------------------------------
def mlp_reference(layers, x):
    h = x.astype(jnp.float32)
    for li, (w, b) in enumerate(layers):
        h = h @ w.T + b
        if li < len(layers) - 1:
            h = jax.nn.relu(h)
    return h


# ----------------------------------- main ------------------------------------
if __name__ == "__main__":
    key = jax.random.PRNGKey(0)
    kp, kx = jax.random.split(key)

    B, P = 2, 256   # 512 rows -> tile_m = 256, grid = (2,)
    layers = init_mlp_params(kp, IN_CHANNELS, OUT_CHANNELS,
                             HIDDEN_CHANNELS, HIDDEN_LAYERS)
    x = jax.random.normal(kx, (B, P, IN_CHANNELS), jnp.float32)

    ref = mlp_reference(layers, x)

    # f32 path: numerically matches the PyTorch forward.
    fwd_f32 = jax.jit(lambda ls, xx: mlp_forward(ls, xx, matmul_dtype=jnp.float32))
    out_f32 = fwd_f32(layers, x)
    jax.block_until_ready(out_f32)
    assert out_f32.shape == (B, P, OUT_CHANNELS)
    err_f32 = float(jnp.max(jnp.abs(out_f32 - ref)))
    assert err_f32 < 5e-3, f"f32 path max abs error vs reference: {err_f32}"

    # Default perf path: bf16 MXU operands with f32 accumulation.
    fwd_bf16 = jax.jit(lambda ls, xx: mlp_forward(ls, xx, matmul_dtype=jnp.bfloat16))
    out_bf16 = fwd_bf16(layers, x)
    jax.block_until_ready(out_bf16)
    assert out_bf16.shape == (B, P, OUT_CHANNELS)
    err_bf16 = float(jnp.max(jnp.abs(out_bf16 - ref)))
    assert err_bf16 < 2e-2, f"bf16 path max abs error vs reference: {err_bf16}"

    print("KERNEL_OK")
</pallas_src>

<mosaic_0001>
module attributes {stable_mosaic.version = 11 : i64} {
  func.func @_fused_mlp_kernel(%arg0: i32, %arg1: memref<256x4xf32, #tpu.memory_space<vmem>>, %arg2: memref<32x4xf32, #tpu.memory_space<vmem>>, %arg3: memref<4x32x32xf32, #tpu.memory_space<vmem>>, %arg4: memref<3x32xf32, #tpu.memory_space<vmem>>, %arg5: memref<32x6xf32, #tpu.memory_space<vmem>>, %arg6: memref<3x256xf32, #tpu.memory_space<vmem>>) attributes {dimension_semantics = [#tpu.dimension_semantics<parallel>], iteration_bounds = array<i64: 2>, scalar_prefetch = 0 : i64, scratch_operands = 0 : i64, tpu.core_type = #tpu.core_type<tc>, window_params = [{transform_indices = @transform_0, window_bounds = array<i64: 256, 4>}, {pipeline_mode = #tpu.pipeline_mode<synchronous>, transform_indices = @transform_1, window_bounds = array<i64: 32, 4>}, {pipeline_mode = #tpu.pipeline_mode<synchronous>, transform_indices = @transform_2, window_bounds = array<i64: 4, 32, 32>}, {pipeline_mode = #tpu.pipeline_mode<synchronous>, transform_indices = @transform_3, window_bounds = array<i64: 3, 32>}, {pipeline_mode = #tpu.pipeline_mode<synchronous>, transform_indices = @transform_4, window_bounds = array<i64: 32, 6>}, {transform_indices = @transform_5, window_bounds = array<i64: 3, 256>}]} {
    %c0 = arith.constant 0 : index
    %c0_0 = arith.constant 0 : index
    %0 = vector.load %arg1[%c0, %c0_0] : memref<256x4xf32, #tpu.memory_space<vmem>>, vector<256x4xf32>
    %c0_1 = arith.constant 0 : index
    %c0_2 = arith.constant 0 : index
    %1 = vector.load %arg2[%c0_1, %c0_2] : memref<32x4xf32, #tpu.memory_space<vmem>>, vector<32x4xf32>
    %cst = arith.constant dense<0.000000e+00> : vector<32x256xf32>
    %2 = tpu.matmul %1, %0, %cst {dimension_numbers = #tpu.dot_dimension_numbers<[1], [1], [0], [0], [0, 0, 1, 0], [], []>} : vector<32x4xf32>, vector<256x4xf32>, vector<32x256xf32> -> vector<32x256xf32>
    %c0_3 = arith.constant 0 : index
    %c0_4 = arith.constant 0 : index
    %3 = vector.load %arg5[%c0_3, %c0_4] : memref<32x6xf32, #tpu.memory_space<vmem>>, vector<32x1xf32>
    %4 = vector.broadcast %3 : vector<32x1xf32> to vector<32x256xf32>
    %5 = arith.addf %2, %4 : vector<32x256xf32>
    %cst_5 = arith.constant 0.000000e+00 : f32
    %6 = vector.broadcast %cst_5 : f32 to vector<32x256xf32>
    %7 = arith.maximumf %5, %6 : vector<32x256xf32>
    %c0_6 = arith.constant 0 : index
    %c0_7 = arith.constant 0 : index
    %c0_8 = arith.constant 0 : index
    %8 = vector.load %arg3[%c0_6, %c0_7, %c0_8] : memref<4x32x32xf32, #tpu.memory_space<vmem>>, vector<1x32x32xf32>
    %9 = vector.shape_cast %8 : vector<1x32x32xf32> to vector<32x32xf32>
    %cst_9 = arith.constant dense<0.000000e+00> : vector<32x256xf32>
    %10 = tpu.matmul %9, %7, %cst_9 {dimension_numbers = #tpu.dot_dimension_numbers<[1], [0], [0], [1], [0, 0, 1, 1], [], []>} : vector<32x32xf32>, vector<32x256xf32>, vector<32x256xf32> -> vector<32x256xf32>
    %c0_10 = arith.constant 0 : index
    %c1 = arith.constant 1 : index
    %11 = vector.load %arg5[%c0_10, %c1] : memref<32x6xf32, #tpu.memory_space<vmem>>, vector<32x1xf32>
    %12 = vector.broadcast %11 : vector<32x1xf32> to vector<32x256xf32>
    %13 = arith.addf %10, %12 : vector<32x256xf32>
    %cst_11 = arith.constant 0.000000e+00 : f32
    %14 = vector.broadcast %cst_11 : f32 to vector<32x256xf32>
    %15 = arith.maximumf %13, %14 : vector<32x256xf32>
    %c1_12 = arith.constant 1 : index
    %c0_13 = arith.constant 0 : index
    %c0_14 = arith.constant 0 : index
    %16 = vector.load %arg3[%c1_12, %c0_13, %c0_14] : memref<4x32x32xf32, #tpu.memory_space<vmem>>, vector<1x32x32xf32>
    %17 = vector.shape_cast %16 : vector<1x32x32xf32> to vector<32x32xf32>
    %cst_15 = arith.constant dense<0.000000e+00> : vector<32x256xf32>
    %18 = tpu.matmul %17, %15, %cst_15 {dimension_numbers = #tpu.dot_dimension_numbers<[1], [0], [0], [1], [0, 0, 1, 1], [], []>} : vector<32x32xf32>, vector<32x256xf32>, vector<32x256xf32> -> vector<32x256xf32>
    %c0_16 = arith.constant 0 : index
    %c2 = arith.constant 2 : index
    %19 = vector.load %arg5[%c0_16, %c2] : memref<32x6xf32, #tpu.memory_space<vmem>>, vector<32x1xf32>
    %20 = vector.broadcast %19 : vector<32x1xf32> to vector<32x256xf32>
    %21 = arith.addf %18, %20 : vector<32x256xf32>
    %cst_17 = arith.constant 0.000000e+00 : f32
    %22 = vector.broadcast %cst_17 : f32 to vector<32x256xf32>
    %23 = arith.maximumf %21, %22 : vector<32x256xf32>
    %c2_18 = arith.constant 2 : index
    %c0_19 = arith.constant 0 : index
    %c0_20 = arith.constant 0 : index
    %24 = vector.load %arg3[%c2_18, %c0_19, %c0_20] : memref<4x32x32xf32, #tpu.memory_space<vmem>>, vector<1x32x32xf32>
    %25 = vector.shape_cast %24 : vector<1x32x32xf32> to vector<32x32xf32>
    %cst_21 = arith.constant dense<0.000000e+00> : vector<32x256xf32>
    %26 = tpu.matmul %25, %23, %cst_21 {dimension_numbers = #tpu.dot_dimension_numbers<[1], [0], [0], [1], [0, 0, 1, 1], [], []>} : vector<32x32xf32>, vector<32x256xf32>, vector<32x256xf32> -> vector<32x256xf32>
    %c0_22 = arith.constant 0 : index
    %c3 = arith.constant 3 : index
    %27 = vector.load %arg5[%c0_22, %c3] : memref<32x6xf32, #tpu.memory_space<vmem>>, vector<32x1xf32>
    %28 = vector.broadcast %27 : vector<32x1xf32> to vector<32x256xf32>
    %29 = arith.addf %26, %28 : vector<32x256xf32>
    %cst_23 = arith.constant 0.000000e+00 : f32
    %30 = vector.broadcast %cst_23 : f32 to vector<32x256xf32>
    %31 = arith.maximumf %29, %30 : vector<32x256xf32>
    %c3_24 = arith.constant 3 : index
    %c0_25 = arith.constant 0 : index
    %c0_26 = arith.constant 0 : index
    %32 = vector.load %arg3[%c3_24, %c0_25, %c0_26] : memref<4x32x32xf32, #tpu.memory_space<vmem>>, vector<1x32x32xf32>
    %33 = vector.shape_cast %32 : vector<1x32x32xf32> to vector<32x32xf32>
    %cst_27 = arith.constant dense<0.000000e+00> : vector<32x256xf32>
    %34 = tpu.matmul %33, %31, %cst_27 {dimension_numbers = #tpu.dot_dimension_numbers<[1], [0], [0], [1], [0, 0, 1, 1], [], []>} : vector<32x32xf32>, vector<32x256xf32>, vector<32x256xf32> -> vector<32x256xf32>
    %c0_28 = arith.constant 0 : index
    %c4 = arith.constant 4 : index
    %35 = vector.load %arg5[%c0_28, %c4] : memref<32x6xf32, #tpu.memory_space<vmem>>, vector<32x1xf32>
    %36 = vector.broadcast %35 : vector<32x1xf32> to vector<32x256xf32>
    %37 = arith.addf %34, %36 : vector<32x256xf32>
    %cst_29 = arith.constant 0.000000e+00 : f32
    %38 = vector.broadcast %cst_29 : f32 to vector<32x256xf32>
    %39 = arith.maximumf %37, %38 : vector<32x256xf32>
    %c0_30 = arith.constant 0 : index
    %c0_31 = arith.constant 0 : index
    %40 = vector.load %arg4[%c0_30, %c0_31] : memref<3x32xf32, #tpu.memory_space<vmem>>, vector<3x32xf32>
    %cst_32 = arith.constant dense<0.000000e+00> : vector<3x256xf32>
    %41 = tpu.matmul %40, %39, %cst_32 {dimension_numbers = #tpu.dot_dimension_numbers<[1], [0], [0], [1], [0, 0, 1, 1], [], []>} : vector<3x32xf32>, vector<32x256xf32>, vector<3x256xf32> -> vector<3x256xf32>
    %c0_33 = arith.constant 0 : index
    %c5 = arith.constant 5 : index
    %42 = vector.load %arg5[%c0_33, %c5] : memref<32x6xf32, #tpu.memory_space<vmem>>, vector<3x1xf32>
    %43 = vector.broadcast %42 : vector<3x1xf32> to vector<3x256xf32>
    %44 = arith.addf %41, %43 : vector<3x256xf32>
    %c0_34 = arith.constant 0 : index
    %c0_35 = arith.constant 0 : index
    %45 = vector.load %arg6[%c0_34, %c0_35] : memref<3x256xf32, #tpu.memory_space<vmem>>, vector<3x256xf32>
    tpu.vector_store %arg6[%c0_34, %c0_35], %44 {strides = array<i32>} : memref<3x256xf32, #tpu.memory_space<vmem>>, vector<3x256xf32>,
    return
  }
  func.func @transform_0(%arg0: i32) -> (i32, i32) {
    %c0_i32 = arith.constant 0 : i32
    %c0_i32_0 = arith.constant 0 : i32
    return %arg0, %c0_i32 : i32, i32
  }
  func.func @transform_1(%arg0: i32) -> (i32, i32) {
    %c0_i32 = arith.constant 0 : i32
    %c0_i32_0 = arith.constant 0 : i32
    %c0_i32_1 = arith.constant 0 : i32
    return %c0_i32, %c0_i32_0 : i32, i32
  }
  func.func @transform_2(%arg0: i32) -> (i32, i32, i32) {
    %c0_i32 = arith.constant 0 : i32
    %c0_i32_0 = arith.constant 0 : i32
    %c0_i32_1 = arith.constant 0 : i32
    %c0_i32_2 = arith.constant 0 : i32
    return %c0_i32, %c0_i32_0, %c0_i32_1 : i32, i32, i32
  }
  func.func @transform_3(%arg0: i32) -> (i32, i32) {
    %c0_i32 = arith.constant 0 : i32
    %c0_i32_0 = arith.constant 0 : i32
    %c0_i32_1 = arith.constant 0 : i32
    return %c0_i32, %c0_i32_0 : i32, i32
  }
  func.func @transform_4(%arg0: i32) -> (i32, i32) {
    %c0_i32 = arith.constant 0 : i32
    %c0_i32_0 = arith.constant 0 : i32
    %c0_i32_1 = arith.constant 0 : i32
    return %c0_i32, %c0_i32_0 : i32, i32
  }
  func.func @transform_5(%arg0: i32) -> (i32, i32) {
    %c0_i32 = arith.constant 0 : i32
    %c0_i32_0 = arith.constant 0 : i32
    return %c0_i32, %arg0 : i32, i32
  }
}

</mosaic_0001>

<llo_original>
// kernel: _lambda_.1
$region0: #{_lambda_.1}
  #allocation0 [shape = 'u32[]', space=smem, size = 0x4, offset = 0x4, fixed_abs, tag = 'smem constant byte address 0x4 - core index']
  #allocation1 [shape = 'u32[72,128]{1,0:T(1,128)}', space=vmem, size = 0x9000, scoped, tag = 'internal scratch']
  %s0 = inlined_call_operand.vmem [shape: f32[512,4], index: 0, kind: input, shape index: {}]
  %s1 = inlined_call_operand.vmem [shape: f32[32,4], index: 1, kind: input, shape index: {}]
  %s2 = inlined_call_operand.vmem [shape: f32[4,32,32], index: 2, kind: input, shape index: {}]
  %s3 = inlined_call_operand.vmem [shape: f32[3,32], index: 3, kind: input, shape index: {}]
  %s4 = inlined_call_operand.vmem [shape: f32[32,6], index: 4, kind: input, shape index: {}]
  %s5 = inlined_call_operand.vmem [shape: f32[3,512], index: 5, kind: output, shape index: {}]
  %s6 = sld [smem:[#allocation0]]
  $region53: #{_lambda_.1} parent=0
    _
  %s8 = ssub.s32 1, %s6
  %s9 = scalar_select 0, %s8, %s6
  loop: start=0, step=1, limit=4
  $region2: #{_lambda_.1} parent=0 // loop_pre_header
    _
  $region3: #{_lambda_.1} parent=0 // loop_header
    %s11 = sphi 0, %s15
    %p12 = scmp.ge.s32.totalorder %s11, 4
    %s21 = sphi 0, %s23
    %s24 = sphi 0, %s21
    %s25 = sphi 0, %s24
    %s41 = sphi 0, %s25
    %s45 = sphi 0, %s45
    %s47 = sphi 0, %s45
    %s48 = sphi 0, %s47
    %s62 = sphi 0, %s48
    %s66 = sphi 0, %s66
    %s68 = sphi 0, %s66
    %s69 = sphi 0, %s68
    %s83 = sphi 0, %s69
    %s87 = sphi 0, %s87
    %s89 = sphi 0, %s87
    %s90 = sphi 0, %s89
    %s104 = sphi 0, %s90
    %s108 = sphi 0, %s108
    %s110 = sphi 0, %s108
    %s111 = sphi 0, %s110
    %s125 = sphi 0, %s111
    %s131 = sphi 0, %s133
    %s134 = sphi 0, %s131
    %s135 = sphi 0, %s134
    %s151 = sphi 0, %s135
  $region4: #{_lambda_.1} parent=0 // loop_header_branch
    %14 = sbr.rel (%p12) target = $region8
  $region5: #{_lambda_.1} parent=0 // loop_body
    %s16 = ssub.s32 %s11, 1
    %s17 = ssub.s32 %s11, 2
    %s18 = sadd.s32 %s11, 1
    %s19 = ssub.s32 %s11, %s18
    %p20 = scmp.eq.s32.totalorder %s19, 0
    %s22 = sadd.s32 %s21, 1
    %s23 = scalar_select %p20, %s21, %s22
    %p26 = pneg %p20
    %p27 = scmp.eq.s32.totalorder %s11, 1
    %p28 = por %p26, %p27
    %p29 = scmp.ne.s32.totalorder %s21, %s24
    %p30 = scmp.eq.s32.totalorder %s11, 0
    %p31 = por %p29, %p30
    %p32 = scmp.ne.s32.totalorder %s21, %s24
    %p33 = scmp.eq.s32.totalorder %s16, 1
    %p34 = por %p32, %p33
    %p35 = scmp.ne.s32.totalorder %s24, %s25
    %p36 = scmp.eq.s32.totalorder %s16, 0
    %p37 = por %p35, %p36
    %p38 = scmp.ne.s32.totalorder %s24, %s25
    %p39 = scmp.eq.s32.totalorder %s17, 1
    %p40 = por %p38, %p39
    %p42 = scmp.ne.s32.totalorder %s25, %s41
    %p43 = scmp.eq.s32.totalorder %s17, 0
    %p44 = por %p42, %p43
    %s46 = sadd.s32 %s45, 1
    %p49 = scmp.eq.s32.totalorder %s11, 1
    %p50 = scmp.ne.s32.totalorder %s45, %s47
    %p51 = scmp.eq.s32.totalorder %s11, 0
    %p52 = por %p50, %p51
    %p53 = scmp.ne.s32.totalorder %s45, %s47
    %p54 = scmp.eq.s32.totalorder %s16, 1
    %p55 = por %p53, %p54
    %p56 = scmp.ne.s32.totalorder %s47, %s48
    %p57 = scmp.eq.s32.totalorder %s16, 0
    %p58 = por %p56, %p57
    %p59 = scmp.ne.s32.totalorder %s47, %s48
    %p60 = scmp.eq.s32.totalorder %s17, 1
    %p61 = por %p59, %p60
    %p63 = scmp.ne.s32.totalorder %s48, %s62
    %p64 = scmp.eq.s32.totalorder %s17, 0
    %p65 = por %p63, %p64
    %s67 = sadd.s32 %s66, 1
    %p70 = scmp.eq.s32.totalorder %s11, 1
    %p71 = scmp.ne.s32.totalorder %s66, %s68
    %p72 = scmp.eq.s32.totalorder %s11, 0
    %p73 = por %p71, %p72
    %p74 = scmp.ne.s32.totalorder %s66, %s68
    %p75 = scmp.eq.s32.totalorder %s16, 1
    %p76 = por %p74, %p75
    %p77 = scmp.ne.s32.totalorder %s68, %s69
    %p78 = scmp.eq.s32.totalorder %s16, 0
    %p79 = por %p77, %p78
    %p80 = scmp.ne.s32.totalorder %s68, %s69
    %p81 = scmp.eq.s32.totalorder %s17, 1
    %p82 = por %p80, %p81
    %p84 = scmp.ne.s32.totalorder %s69, %s83
    %p85 = scmp.eq.s32.totalorder %s17, 0
    %p86 = por %p84, %p85
    %s88 = sadd.s32 %s87, 1
    %p91 = scmp.eq.s32.totalorder %s11, 1
    %p92 = scmp.ne.s32.totalorder %s87, %s89
    %p93 = scmp.eq.s32.totalorder %s11, 0
    %p94 = por %p92, %p93
    %p95 = scmp.ne.s32.totalorder %s87, %s89
    %p96 = scmp.eq.s32.totalorder %s16, 1
    %p97 = por %p95, %p96
    %p98 = scmp.ne.s32.totalorder %s89, %s90
    %p99 = scmp.eq.s32.totalorder %s16, 0
    %p100 = por %p98, %p99
    %p101 = scmp.ne.s32.totalorder %s89, %s90
    %p102 = scmp.eq.s32.totalorder %s17, 1
    %p103 = por %p101, %p102
    %p105 = scmp.ne.s32.totalorder %s90, %s104
    %p106 = scmp.eq.s32.totalorder %s17, 0
    %p107 = por %p105, %p106
    %s109 = sadd.s32 %s108, 1
    %p112 = scmp.eq.s32.totalorder %s11, 1
    %p113 = scmp.ne.s32.totalorder %s108, %s110
    %p114 = scmp.eq.s32.totalorder %s11, 0
    %p115 = por %p113, %p114
    %p116 = scmp.ne.s32.totalorder %s108, %s110
    %p117 = scmp.eq.s32.totalorder %s16, 1
    %p118 = por %p116, %p117
    %p119 = scmp.ne.s32.totalorder %s110, %s111
    %p120 = scmp.eq.s32.totalorder %s16, 0
    %p121 = por %p119, %p120
    %p122 = scmp.ne.s32.totalorder %s110, %s111
    %p123 = scmp.eq.s32.totalorder %s17, 1
    %p124 = por %p122, %p123
    %p126 = scmp.ne.s32.totalorder %s111, %s125
    %p127 = scmp.eq.s32.totalorder %s17, 0
    %p128 = por %p126, %p127
    %s129 = ssub.s32 %s11, %s18
    %p130 = scmp.eq.s32.totalorder %s129, 0
    %s132 = sadd.s32 %s131, 1
    %s133 = scalar_select %p130, %s131, %s132
    %p136 = pneg %p130
    %p137 = scmp.eq.s32.totalorder %s11, 1
    %p138 = por %p136, %p137
    %p139 = scmp.ne.s32.totalorder %s131, %s134
    %p140 = scmp.eq.s32.totalorder %s11, 0
    %p141 = por %p139, %p140
    %p142 = scmp.ne.s32.totalorder %s131, %s134
    %p143 = scmp.eq.s32.totalorder %s16, 1
    %p144 = por %p142, %p143
    %p145 = scmp.ne.s32.totalorder %s134, %s135
    %p146 = scmp.eq.s32.totalorder %s16, 0
    %p147 = por %p145, %p146
    %p148 = scmp.ne.s32.totalorder %s134, %s135
    %p149 = scmp.eq.s32.totalorder %s17, 1
    %p150 = por %p148, %p149
    %p152 = scmp.ne.s32.totalorder %s135, %s151
    %p153 = scmp.eq.s32.totalorder %s17, 0
    %p154 = por %p152, %p153
    %p155 = scmp.le.s32.totalorder 1, %s11
    %p156 = scmp.lt.s32.totalorder %s11, 3
    %p157 = pnand %p155, %p156
    %p158 = pneg %p157
    // Predicated region
    $region9: #{_lambda_.1} parent=5 // pred_check
      _
    $region10: #{_lambda_.1} parent=5 // pred_check_branch
      %160 = sbr.rel (%p157) target = $region12
    $region11: #{_lambda_.1} parent=5 // pred_region
      %s161 = ssub.s32 %s11, 1
      // Predicated region
      $region13: #{_lambda_.1} parent=11 // pred_check
        %p162 = pneg %p58
      $region14: #{_lambda_.1} parent=11 // pred_check_branch
        %164 = sbr.rel (%p162) target = $region16
      $region15: #{_lambda_.1} parent=11 // pred_region
        _
      $region16: #{_lambda_.1} parent=11 // pred_fallthru
        _
      // Predicated region
      $region17: #{_lambda_.1} parent=11 // pred_check
        %p165 = pneg %p79
      $region18: #{_lambda_.1} parent=11 // pred_check_branch
        %167 = sbr.rel (%p165) target = $region20
      $region19: #{_lambda_.1} parent=11 // pred_region
        _
      $region20: #{_lambda_.1} parent=11 // pred_fallthru
        _
      // Predicated region
      $region21: #{_lambda_.1} parent=11 // pred_check
        %p168 = pneg %p100
      $region22: #{_lambda_.1} parent=11 // pred_check_branch
        %170 = sbr.rel (%p168) target = $region24
      $region23: #{_lambda_.1} parent=11 // pred_region
        _
      $region24: #{_lambda_.1} parent=11 // pred_fallthru
        _
      // Predicated region
      $region25: #{_lambda_.1} parent=11 // pred_check
        %p171 = pneg %p121
      $region26: #{_lambda_.1} parent=11 // pred_check_branch
        %173 = sbr.rel (%p171) target = $region28
      $region27: #{_lambda_.1} parent=11 // pred_region
        _
      $region28: #{_lambda_.1} parent=11 // pred_fallthru
        _
    $region12: #{_lambda_.1} parent=5 // pred_fallthru
      _
    %p174 = scmp.lt.s32.totalorder %s11, 2
    // Predicated region
    $region29: #{_lambda_.1} parent=5 // pred_check
      %p175 = pneg %p174
    $region30: #{_lambda_.1} parent=5 // pred_check_branch
      %177 = sbr.rel (%p175) target = $region32
    $region31: #{_lambda_.1} parent=5 // pred_region
      // Predicated region
      $region33: #{_lambda_.1} parent=31 // pred_check
        %p178 = pneg %p31
      $region34: #{_lambda_.1} parent=31 // pred_check_branch
        %180 = sbr.rel (%p178) target = $region36
      $region35: #{_lambda_.1} parent=31 // pred_region
        %s181 = smul.u32 32, %s11
        %p182 = scmp.lt.s32.totalorder %s181, 63
        %s183 = scalar_select %p182, %s181, 63
        %s184 = smul.addr %s183, 8
        %s185 = scalar_lea.vmem %s0, %s184
        %s186 = smul.u32 32, %s11
      $region36: #{_lambda_.1} parent=31 // pred_fallthru
        _
    $region32: #{_lambda_.1} parent=5 // pred_fallthru
      _
    %p187 = scmp.le.s32.totalorder 1, %s11
    %p188 = scmp.lt.s32.totalorder %s11, 3
    %p189 = pnand %p187, %p188
    %p190 = pneg %p189
    // Predicated region
    $region37: #{_lambda_.1} parent=5 // pred_check
      _
    $region38: #{_lambda_.1} parent=5 // pred_check_branch
      %192 = sbr.rel (%p189) target = $region40
    $region39: #{_lambda_.1} parent=5 // pred_region
      %s193 = ssub.s32 %s11, 1
      %s194 = smul.u32 32, %s16
      %p195 = scmp.lt.s32.totalorder %s194, 63
      %s196 = scalar_select %p195, %s194, 63
      %s197 = smul.addr %s196, 8
      %s198 = scalar_lea.vmem %s0, %s197
      %p199 = pneg %p37
      %p200 = pneg %p34
      %p201 = pneg %p58
      %p202 = pneg %p55
      %p203 = pneg %p79
      %p204 = pneg %p76
      %p205 = pneg %p100
      %p206 = pneg %p97
      %p207 = pneg %p121
      %p208 = pneg %p118
      %p209 = pneg %p147
      %p210 = pneg %p144
      %s211 = smul.u32 2, %s16
      %p212 = scmp.lt.s32.totalorder %s211, 3
      %s213 = scalar_select %p212, %s211, 3
      %s214 = smul.addr %s213, 4
      %s215 = scalar_lea.vmem %s5, %s214
      %s216 = smul.u32 32, %s16
      %p217 = scmp.lt.s32.totalorder %s216, 63
      %s218 = scalar_select %p217, %s216, 63
      %s219 = smul.addr %s218, 8
      %s220 = scalar_lea.vmem %s0, %s219
      %s221 = smul.u32 32, %s16
      %s222 = smul.u32 2, %s16
      %p223 = scmp.lt.s32.totalorder %s222, 3
      %s224 = scalar_select %p223, %s222, 3
      %s225 = smul.addr %s224, 4
      %s226 = scalar_lea.vmem %s5, %s225
      %s227 = smul.u32 2, %s16
      %v228 = vld [vmem:[%s220] sm:$0xff]
      %v229 = vld [vmem:[%s220 + $0x8] sm:$0xff]
      %v230 = vld [vmem:[%s220 + $0x10] sm:$0xff]
      %v231 = vld [vmem:[%s220 + $0x18] sm:$0xff]
      %v232 = vld [vmem:[%s220 + $0x20] sm:$0xff]
      %v233 = vld [vmem:[%s220 + $0x28] sm:$0xff]
      %v234 = vld [vmem:[%s220 + $0x30] sm:$0xff]
      %v235 = vld [vmem:[%s220 + $0x38] sm:$0xff]
      %v236 = vld [vmem:[%s220 + $0x40] sm:$0xff]
      %v237 = vld [vmem:[%s220 + $0x48] sm:$0xff]
      %v238 = vld [vmem:[%s220 + $0x50] sm:$0xff]
      %v239 = vld [vmem:[%s220 + $0x58] sm:$0xff]
      %v240 = vld [vmem:[%s220 + $0x60] sm:$0xff]
      %v241 = vld [vmem:[%s220 + $0x68] sm:$0xff]
      %v242 = vld [vmem:[%s220 + $0x70] sm:$0xff]
      %v243 = vld [vmem:[%s220 + $0x78] sm:$0xff]
      %v244 = vld [vmem:[%s220 + $0x80] sm:$0xff]
      %v245 = vld [vmem:[%s220 + $0x88] sm:$0xff]
      %v246 = vld [vmem:[%s220 + $0x90] sm:$0xff]
      %v247 = vld [vmem:[%s220 + $0x98] sm:$0xff]
      %v248 = vld [vmem:[%s220 + $0xa0] sm:$0xff]
      %v249 = vld [vmem:[%s220 + $0xa8] sm:$0xff]
      %v250 = vld [vmem:[%s220 + $0xb0] sm:$0xff]
      %v251 = vld [vmem:[%s220 + $0xb8] sm:$0xff]
      %v252 = vld [vmem:[%s220 + $0xc0] sm:$0xff]
      %v253 = vld [vmem:[%s220 + $0xc8] sm:$0xff]
      %v254 = vld [vmem:[%s220 + $0xd0] sm:$0xff]
      %v255 = vld [vmem:[%s220 + $0xd8] sm:$0xff]
      %v256 = vld [vmem:[%s220 + $0xe0] sm:$0xff]
      %v257 = vld [vmem:[%s220 + $0xe8] sm:$0xff]
      %v258 = vld [vmem:[%s220 + $0xf0] sm:$0xff]
      %v259 = vld [vmem:[%s220 + $0xf8] sm:$0xff]
      %v260 = vld [vmem:[%s1] sm:$0xff]
      %v261 = vld [vmem:[%s1 + $0x8] sm:$0xff]
      %v262 = vld [vmem:[%s1 + $0x10] sm:$0xff]
      %v263 = vld [vmem:[%s1 + $0x18] sm:$0xff]
      %v264 = vld [vmem:[%s4] sm:$0xff]
      %v265 = vld [vmem:[%s4 + $0x8] sm:$0xff]
      %v266 = vld [vmem:[%s4 + $0x10] sm:$0xff]
      %v267 = vld [vmem:[%s4 + $0x18] sm:$0xff]
      %269 = vset.pattern.permute.xlu0 0
      %270 = vperm.xlu0 %269, %v264
      %v271 = vpop.permute.xlu0 %270
      %274 = vset.pattern.permute.xlu0 0
      %275 = vperm.xlu0 %274, %v265
      %v276 = vpop.permute.xlu0 %275
      %279 = vset.pattern.permute.xlu0 0
      %280 = vperm.xlu0 %279, %v266
      %v281 = vpop.permute.xlu0 %280
      %284 = vset.pattern.permute.xlu0 0
      %285 = vperm.xlu0 %284, %v267
      %v286 = vpop.permute.xlu0 %285
      %vm288 = vcmask 31744
      %v290 = vsel %vm288, %v260, 0
      %v293 = vsel %vm288, %v261, 0
      %v296 = vsel %vm288, %v262, 0
      %v299 = vsel %vm288, %v263, 0
      %v302 = vsel %vm288, %v228, 0
      %v305 = vsel %vm288, %v229, 0
      %v308 = vsel %vm288, %v230, 0
      %v311 = vsel %vm288, %v231, 0
      %v314 = vsel %vm288, %v232, 0
      %v317 = vsel %vm288, %v233, 0
      %v320 = vsel %vm288, %v234, 0
      %v323 = vsel %vm288, %v235, 0
      %v326 = vsel %vm288, %v236, 0
      %v329 = vsel %vm288, %v237, 0
      %v332 = vsel %vm288, %v238, 0
      %v335 = vsel %vm288, %v239, 0
      %v338 = vsel %vm288, %v240, 0
      %v341 = vsel %vm288, %v241, 0
      %v344 = vsel %vm288, %v242, 0
      %v347 = vsel %vm288, %v243, 0
      %v350 = vsel %vm288, %v244, 0
      %v353 = vsel %vm288, %v245, 0
      %v356 = vsel %vm288, %v246, 0
      %v359 = vsel %vm288, %v247, 0
      %v362 = vsel %vm288, %v248, 0
      %v365 = vsel %vm288, %v249, 0
      %v368 = vsel %vm288, %v250, 0
      %v371 = vsel %vm288, %v251, 0
      %v374 = vsel %vm288, %v252, 0
      %v377 = vsel %vm288, %v253, 0
      %v380 = vsel %vm288, %v254, 0
      %v383 = vsel %vm288, %v255, 0
      %v386 = vsel %vm288, %v256, 0
      %v389 = vsel %vm288, %v257, 0
      %v392 = vsel %vm288, %v258, 0
      %v395 = vsel %vm288, %v259, 0
      %397 = vmatpush.xpose.msra.mxu0 %v347
      %398 = vmatpush.xpose.msra.mxu0 %v344
      %399 = vmatpush.xpose.msra.mxu0 %v341
      %400 = vmatpush.xpose.msra.mxu0 %v338
      %401 = vmatpush.xpose.msra.mxu0 %v335
      %402 = vmatpush.xpose.msra.mxu0 %v332
      %403 = vmatpush.xpose.msra.mxu0 %v329
      %404 = vmatpush.xpose.msra.mxu0 %v326
      %405 = vmatpush.xpose.msra.mxu0 %v323
      %406 = vmatpush.xpose.msra.mxu0 %v320
      %407 = vmatpush.xpose.msra.mxu0 %v317
      %408 = vmatpush.xpose.msra.mxu0 %v314
      %409 = vmatpush.xpose.msra.mxu0 %v311
      %410 = vmatpush.xpose.msra.mxu0 %v308
      %411 = vmatpush.xpose.msra.mxu0 %v305
      %412 = vmatpush.xpose.msra.mxu0 %v302
      %413 = vmatmul.f32.gmra.mxu0 %v290
      %v414 = vpop.f32.mrf.mxu0
      %v415 = vadd.f32 %v271, %v414
      %416 = vmatmul.f32.gmra.mxu0 %v293
      %v417 = vpop.f32.mrf.mxu0
      %v418 = vadd.f32 %v276, %v417
      %419 = vmatmul.f32.gmra.mxu0 %v296
      %v420 = vpop.f32.mrf.mxu0
      %v421 = vadd.f32 %v281, %v420
      %422 = vmatmul.f32.gmra.mxu0 %v299
      %v423 = vpop.f32.mrf.mxu0
      %v424 = vadd.f32 %v286, %v423
      %425 = vdwg.mxu0
      %426 = vmatpush.xpose.msra.mxu0 %v395
      %427 = vmatpush.xpose.msra.mxu0 %v392
      %428 = vmatpush.xpose.msra.mxu0 %v389
      %429 = vmatpush.xpose.msra.mxu0 %v386
      %430 = vmatpush.xpose.msra.mxu0 %v383
      %431 = vmatpush.xpose.msra.mxu0 %v380
      %432 = vmatpush.xpose.msra.mxu0 %v377
      %433 = vmatpush.xpose.msra.mxu0 %v374
      %434 = vmatpush.xpose.msra.mxu0 %v371
      %435 = vmatpush.xpose.msra.mxu0 %v368
      %436 = vmatpush.xpose.msra.mxu0 %v365
      %437 = vmatpush.xpose.msra.mxu0 %v362
      %438 = vmatpush.xpose.msra.mxu0 %v359
      %439 = vmatpush.xpose.msra.mxu0 %v356
      %440 = vmatpush.xpose.msra.mxu0 %v353
      %441 = vmatpush.xpose.msra.mxu0 %v350
      %442 = vmatmul.f32.gmra.mxu0 %v290
      %v443 = vpop.f32.mrf.mxu0
      %v444 = vadd.f32 %v271, %v443
      %445 = vmatmul.f32.gmra.mxu0 %v293
      %v446 = vpop.f32.mrf.mxu0
      %v447 = vadd.f32 %v276, %v446
      %448 = vmatmul.f32.gmra.mxu0 %v296
      %v449 = vpop.f32.mrf.mxu0
      %v450 = vadd.f32 %v281, %v449
      %451 = vmatmul.f32.gmra.mxu0 %v299
      %v452 = vpop.f32.mrf.mxu0
      %v453 = vadd.f32 %v286, %v452
      %454 = vdwg.mxu0
      %v455 = vmax.f32 %v415, 0.0
      %v456 = vmax.f32 %v444, 0.0
      %v457 = vmax.f32 %v418, 0.0
      %v458 = vmax.f32 %v447, 0.0
      %v459 = vmax.f32 %v421, 0.0
      %v460 = vmax.f32 %v450, 0.0
      %v461 = vmax.f32 %v424, 0.0
      %v462 = vmax.f32 %v453, 0.0
      %v463 = vld [vmem:[%s2] sm:$0xff]
      %v464 = vld [vmem:[%s2 + $0x8] sm:$0xff]
      %v465 = vld [vmem:[%s2 + $0x10] sm:$0xff]
      %v466 = vld [vmem:[%s2 + $0x18] sm:$0xff]
      %467 = vset.pattern.permute.xlu0 1
      %468 = vperm.xlu0 %467, %v264
      %v469 = vpop.permute.xlu0 %468
      %471 = vset.pattern.permute.xlu0 1
      %472 = vperm.xlu0 %471, %v265
      %v473 = vpop.permute.xlu0 %472
      %475 = vset.pattern.permute.xlu0 1
      %476 = vperm.xlu0 %475, %v266
      %v477 = vpop.permute.xlu0 %476
      %479 = vset.pattern.permute.xlu0 1
      %480 = vperm.xlu0 %479, %v267
      %v481 = vpop.permute.xlu0 %480
      %vm483 = vcmask 261120
      %v485 = vsel %vm483, %v463, 0
      %v488 = vsel %vm483, %v464, 0
      %v491 = vsel %vm483, %v465, 0
      %v494 = vsel %vm483, %v466, 0
      %496 = vmatpush.msra.mxu0 0.0
      %497 = vmatpush.msra.mxu0 0.0
      %498 = vmatpush.msra.mxu0 0.0
      %499 = vmatpush.msra.mxu0 0.0
      %500 = vmatpush.msra.mxu0 0.0
      %501 = vmatpush.msra.mxu0 0.0
      %502 = vmatpush.msra.mxu0 0.0
      %503 = vmatpush.msra.mxu0 0.0
      %504 = vmatpush.msra.mxu0 0.0
      %505 = vmatpush.msra.mxu0 0.0
      %506 = vmatpush.msra.mxu0 0.0
      %507 = vmatpush.msra.mxu0 0.0
      %508 = vmatpush.msra.mxu0 %v461
      %509 = vmatpush.msra.mxu0 %v459
      %510 = vmatpush.msra.mxu0 %v457
      %511 = vmatpush.msra.mxu0 %v455
      %512 = vmatmul.f32.gmra.mxu0 %v485
      %v513 = vpop.f32.mrf.mxu0
      %v514 = vadd.f32 %v469, %v513
      %515 = vmatmul.f32.gmra.mxu0 %v488
      %v516 = vpop.f32.mrf.mxu0
      %v517 = vadd.f32 %v473, %v516
      %518 = vmatmul.f32.gmra.mxu0 %v491
      %v519 = vpop.f32.mrf.mxu0
      %v520 = vadd.f32 %v477, %v519
      %521 = vmatmul.f32.gmra.mxu0 %v494
      %v522 = vpop.f32.mrf.mxu0
      %v523 = vadd.f32 %v481, %v522
      %524 = vdwg.mxu0
      %525 = vmatpush.msra.mxu0 0.0
      %526 = vmatpush.msra.mxu0 0.0
      %527 = vmatpush.msra.mxu0 0.0
      %528 = vmatpush.msra.mxu0 0.0
      %529 = vmatpush.msra.mxu0 0.0
      %530 = vmatpush.msra.mxu0 0.0
      %531 = vmatpush.msra.mxu0 0.0
      %532 = vmatpush.msra.mxu0 0.0
      %533 = vmatpush.msra.mxu0 0.0
      %534 = vmatpush.msra.mxu0 0.0
      %535 = vmatpush.msra.mxu0 0.0
      %536 = vmatpush.msra.mxu0 0.0
      %537 = vmatpush.msra.mxu0 %v462
      %538 = vmatpush.msra.mxu0 %v460
      %539 = vmatpush.msra.mxu0 %v458
      %540 = vmatpush.msra.mxu0 %v456
      %541 = vmatmul.f32.gmra.mxu0 %v485
      %v542 = vpop.f32.mrf.mxu0
      %v543 = vadd.f32 %v469, %v542
      %544 = vmatmul.f32.gmra.mxu0 %v488
      %v545 = vpop.f32.mrf.mxu0
      %v546 = vadd.f32 %v473, %v545
      %547 = vmatmul.f32.gmra.mxu0 %v491
      %v548 = vpop.f32.mrf.mxu0
      %v549 = vadd.f32 %v477, %v548
      %550 = vmatmul.f32.gmra.mxu0 %v494
      %v551 = vpop.f32.mrf.mxu0
      %v552 = vadd.f32 %v481, %v551
      %553 = vdwg.mxu0
      %v554 = vmax.f32 %v514, 0.0
      %v555 = vmax.f32 %v543, 0.0
      %v556 = vmax.f32 %v517, 0.0
      %v557 = vmax.f32 %v546, 0.0
      %v558 = vmax.f32 %v520, 0.0
      %v559 = vmax.f32 %v549, 0.0
      %v560 = vmax.f32 %v523, 0.0
      %v561 = vmax.f32 %v552, 0.0
      %s562 = scalar_lea.vmem %s2, 32
      %v563 = vld [vmem:[%s562] sm:$0xff]
      %v564 = vld [vmem:[%s562 + $0x8] sm:$0xff]
      %v565 = vld [vmem:[%s562 + $0x10] sm:$0xff]
      %v566 = vld [vmem:[%s562 + $0x18] sm:$0xff]
      %567 = vset.pattern.permute.xlu0 2
      %568 = vperm.xlu0 %567, %v264
      %v569 = vpop.permute.xlu0 %568
      %571 = vset.pattern.permute.xlu0 2
      %572 = vperm.xlu0 %571, %v265
      %v573 = vpop.permute.xlu0 %572
      %575 = vset.pattern.permute.xlu0 2
      %576 = vperm.xlu0 %575, %v266
      %v577 = vpop.permute.xlu0 %576
      %579 = vset.pattern.permute.xlu0 2
      %580 = vperm.xlu0 %579, %v267
      %v581 = vpop.permute.xlu0 %580
      %v584 = vsel %vm483, %v563, 0
      %v587 = vsel %vm483, %v564, 0
      %v590 = vsel %vm483, %v565, 0
      %v593 = vsel %vm483, %v566, 0
      %595 = vmatpush.msra.mxu0 0.0
      %596 = vmatpush.msra.mxu0 0.0
      %597 = vmatpush.msra.mxu0 0.0
      %598 = vmatpush.msra.mxu0 0.0
      %599 = vmatpush.msra.mxu0 0.0
      %600 = vmatpush.msra.mxu0 0.0
      %601 = vmatpush.msra.mxu0 0.0
      %602 = vmatpush.msra.mxu0 0.0
      %603 = vmatpush.msra.mxu0 0.0
      %604 = vmatpush.msra.mxu0 0.0
      %605 = vmatpush.msra.mxu0 0.0
      %606 = vmatpush.msra.mxu0 0.0
      %607 = vmatpush.msra.mxu0 %v560
      %608 = vmatpush.msra.mxu0 %v558
      %609 = vmatpush.msra.mxu0 %v556
      %610 = vmatpush.msra.mxu0 %v554
      %611 = vmatmul.f32.gmra.mxu0 %v584
      %v612 = vpop.f32.mrf.mxu0
      %v613 = vadd.f32 %v569, %v612
      %614 = vmatmul.f32.gmra.mxu0 %v587
      %v615 = vpop.f32.mrf.mxu0
      %v616 = vadd.f32 %v573, %v615
      %617 = vmatmul.f32.gmra.mxu0 %v590
      %v618 = vpop.f32.mrf.mxu0
      %v619 = vadd.f32 %v577, %v618
      %620 = vmatmul.f32.gmra.mxu0 %v593
      %v621 = vpop.f32.mrf.mxu0
      %v622 = vadd.f32 %v581, %v621
      %623 = vdwg.mxu0
      %624 = vmatpush.msra.mxu0 0.0
      %625 = vmatpush.msra.mxu0 0.0
      %626 = vmatpush.msra.mxu0 0.0
      %627 = vmatpush.msra.mxu0 0.0
      %628 = vmatpush.msra.mxu0 0.0
      %629 = vmatpush.msra.mxu0 0.0
      %630 = vmatpush.msra.mxu0 0.0
      %631 = vmatpush.msra.mxu0 0.0
      %632 = vmatpush.msra.mxu0 0.0
      %633 = vmatpush.msra.mxu0 0.0
      %634 = vmatpush.msra.mxu0 0.0
      %635 = vmatpush.msra.mxu0 0.0
      %636 = vmatpush.msra.mxu0 %v561
      %637 = vmatpush.msra.mxu0 %v559
      %638 = vmatpush.msra.mxu0 %v557
      %639 = vmatpush.msra.mxu0 %v555
      %640 = vmatmul.f32.gmra.mxu0 %v584
      %v641 = vpop.f32.mrf.mxu0
      %v642 = vadd.f32 %v569, %v641
      %643 = vmatmul.f32.gmra.mxu0 %v587
      %v644 = vpop.f32.mrf.mxu0
      %v645 = vadd.f32 %v573, %v644
      %646 = vmatmul.f32.gmra.mxu0 %v590
      %v647 = vpop.f32.mrf.mxu0
      %v648 = vadd.f32 %v577, %v647
      %649 = vmatmul.f32.gmra.mxu0 %v593
      %v650 = vpop.f32.mrf.mxu0
      %v651 = vadd.f32 %v581, %v650
      %652 = vdwg.mxu0
      %v653 = vmax.f32 %v613, 0.0
      %v654 = vmax.f32 %v642, 0.0
      %v655 = vmax.f32 %v616, 0.0
      %v656 = vmax.f32 %v645, 0.0
      %v657 = vmax.f32 %v619, 0.0
      %v658 = vmax.f32 %v648, 0.0
      %v659 = vmax.f32 %v622, 0.0
      %v660 = vmax.f32 %v651, 0.0
      %s661 = scalar_lea.vmem %s2, 64
      %v662 = vld [vmem:[%s661] sm:$0xff]
      %v663 = vld [vmem:[%s661 + $0x8] sm:$0xff]
      %v664 = vld [vmem:[%s661 + $0x10] sm:$0xff]
      %v665 = vld [vmem:[%s661 + $0x18] sm:$0xff]
      %666 = vset.pattern.permute.xlu0 3
      %667 = vperm.xlu0 %666, %v264
      %v668 = vpop.permute.xlu0 %667
      %670 = vset.pattern.permute.xlu0 3
      %671 = vperm.xlu0 %670, %v265
      %v672 = vpop.permute.xlu0 %671
      %674 = vset.pattern.permute.xlu0 3
      %675 = vperm.xlu0 %674, %v266
      %v676 = vpop.permute.xlu0 %675
      %678 = vset.pattern.permute.xlu0 3
      %679 = vperm.xlu0 %678, %v267
      %v680 = vpop.permute.xlu0 %679
      %v683 = vsel %vm483, %v662, 0
      %v686 = vsel %vm483, %v663, 0
      %v689 = vsel %vm483, %v664, 0
      %v692 = vsel %vm483, %v665, 0
      %694 = vmatpush.msra.mxu0 0.0
      %695 = vmatpush.msra.mxu0 0.0
      %696 = vmatpush.msra.mxu0 0.0
      %697 = vmatpush.msra.mxu0 0.0
      %698 = vmatpush.msra.mxu0 0.0
      %699 = vmatpush.msra.mxu0 0.0
      %700 = vmatpush.msra.mxu0 0.0
      %701 = vmatpush.msra.mxu0 0.0
      %702 = vmatpush.msra.mxu0 0.0
      %703 = vmatpush.msra.mxu0 0.0
      %704 = vmatpush.msra.mxu0 0.0
      %705 = vmatpush.msra.mxu0 0.0
      %706 = vmatpush.msra.mxu0 %v659
      %707 = vmatpush.msra.mxu0 %v657
      %708 = vmatpush.msra.mxu0 %v655
      %709 = vmatpush.msra.mxu0 %v653
      %710 = vmatmul.f32.gmra.mxu0 %v683
      %v711 = vpop.f32.mrf.mxu0
      %v712 = vadd.f32 %v668, %v711
      %713 = vmatmul.f32.gmra.mxu0 %v686
      %v714 = vpop.f32.mrf.mxu0
      %v715 = vadd.f32 %v672, %v714
      %716 = vmatmul.f32.gmra.mxu0 %v689
      %v717 = vpop.f32.mrf.mxu0
      %v718 = vadd.f32 %v676, %v717
      %719 = vmatmul.f32.gmra.mxu0 %v692
      %v720 = vpop.f32.mrf.mxu0
      %v721 = vadd.f32 %v680, %v720
      %722 = vdwg.mxu0
      %723 = vmatpush.msra.mxu0 0.0
      %724 = vmatpush.msra.mxu0 0.0
      %725 = vmatpush.msra.mxu0 0.0
      %726 = vmatpush.msra.mxu0 0.0
      %727 = vmatpush.msra.mxu0 0.0
      %728 = vmatpush.msra.mxu0 0.0
      %729 = vmatpush.msra.mxu0 0.0
      %730 = vmatpush.msra.mxu0 0.0
      %731 = vmatpush.msra.mxu0 0.0
      %732 = vmatpush.msra.mxu0 0.0
      %733 = vmatpush.msra.mxu0 0.0
      %734 = vmatpush.msra.mxu0 0.0
      %735 = vmatpush.msra.mxu0 %v660
      %736 = vmatpush.msra.mxu0 %v658
      %737 = vmatpush.msra.mxu0 %v656
      %738 = vmatpush.msra.mxu0 %v654
      %739 = vmatmul.f32.gmra.mxu0 %v683
      %v740 = vpop.f32.mrf.mxu0
      %v741 = vadd.f32 %v668, %v740
      %742 = vmatmul.f32.gmra.mxu0 %v686
      %v743 = vpop.f32.mrf.mxu0
      %v744 = vadd.f32 %v672, %v743
      %745 = vmatmul.f32.gmra.mxu0 %v689
      %v746 = vpop.f32.mrf.mxu0
      %v747 = vadd.f32 %v676, %v746
      %748 = vmatmul.f32.gmra.mxu0 %v692
      %v749 = vpop.f32.mrf.mxu0
      %v750 = vadd.f32 %v680, %v749
      %751 = vdwg.mxu0
      %v752 = vmax.f32 %v712, 0.0
      %v753 = vmax.f32 %v741, 0.0
      %v754 = vmax.f32 %v715, 0.0
      %v755 = vmax.f32 %v744, 0.0
      %v756 = vmax.f32 %v718, 0.0
      %v757 = vmax.f32 %v747, 0.0
      %v758 = vmax.f32 %v721, 0.0
      %v759 = vmax.f32 %v750, 0.0
      %s760 = scalar_lea.vmem %s2, 96
      %v761 = vld [vmem:[%s760] sm:$0xff]
      %v762 = vld [vmem:[%s760 + $0x8] sm:$0xff]
      %v763 = vld [vmem:[%s760 + $0x10] sm:$0xff]
      %v764 = vld [vmem:[%s760 + $0x18] sm:$0xff]
      %765 = vset.pattern.permute.xlu0 4
      %766 = vperm.xlu0 %765, %v264
      %v767 = vpop.permute.xlu0 %766
      %769 = vset.pattern.permute.xlu0 4
      %770 = vperm.xlu0 %769, %v265
      %v771 = vpop.permute.xlu0 %770
      %773 = vset.pattern.permute.xlu0 4
      %774 = vperm.xlu0 %773, %v266
      %v775 = vpop.permute.xlu0 %774
      %777 = vset.pattern.permute.xlu0 4
      %778 = vperm.xlu0 %777, %v267
      %v779 = vpop.permute.xlu0 %778
      %v782 = vsel %vm483, %v761, 0
      %v785 = vsel %vm483, %v762, 0
      %v788 = vsel %vm483, %v763, 0
      %v791 = vsel %vm483, %v764, 0
      %793 = vmatpush.msra.mxu0 0.0
      %794 = vmatpush.msra.mxu0 0.0
      %795 = vmatpush.msra.mxu0 0.0
      %796 = vmatpush.msra.mxu0 0.0
      %797 = vmatpush.msra.mxu0 0.0
      %798 = vmatpush.msra.mxu0 0.0
      %799 = vmatpush.msra.mxu0 0.0
      %800 = vmatpush.msra.mxu0 0.0
      %801 = vmatpush.msra.mxu0 0.0
      %802 = vmatpush.msra.mxu0 0.0
      %803 = vmatpush.msra.mxu0 0.0
      %804 = vmatpush.msra.mxu0 0.0
      %805 = vmatpush.msra.mxu0 %v758
      %806 = vmatpush.msra.mxu0 %v756
      %807 = vmatpush.msra.mxu0 %v754
      %808 = vmatpush.msra.mxu0 %v752
      %809 = vmatmul.f32.gmra.mxu0 %v782
      %v810 = vpop.f32.mrf.mxu0
      %v811 = vadd.f32 %v767, %v810
      %812 = vmatmul.f32.gmra.mxu0 %v785
      %v813 = vpop.f32.mrf.mxu0
      %v814 = vadd.f32 %v771, %v813
      %815 = vmatmul.f32.gmra.mxu0 %v788
      %v816 = vpop.f32.mrf.mxu0
      %v817 = vadd.f32 %v775, %v816
      %818 = vmatmul.f32.gmra.mxu0 %v791
      %v819 = vpop.f32.mrf.mxu0
      %v820 = vadd.f32 %v779, %v819
      %821 = vdwg.mxu0
      %822 = vmatpush.msra.mxu0 0.0
      %823 = vmatpush.msra.mxu0 0.0
      %824 = vmatpush.msra.mxu0 0.0
      %825 = vmatpush.msra.mxu0 0.0
      %826 = vmatpush.msra.mxu0 0.0
      %827 = vmatpush.msra.mxu0 0.0
      %828 = vmatpush.msra.mxu0 0.0
      %829 = vmatpush.msra.mxu0 0.0
      %830 = vmatpush.msra.mxu0 0.0
      %831 = vmatpush.msra.mxu0 0.0
      %832 = vmatpush.msra.mxu0 0.0
      %833 = vmatpush.msra.mxu0 0.0
      %834 = vmatpush.msra.mxu0 %v759
      %835 = vmatpush.msra.mxu0 %v757
      %836 = vmatpush.msra.mxu0 %v755
      %837 = vmatpush.msra.mxu0 %v753
      %838 = vmatmul.f32.gmra.mxu0 %v782
      %v839 = vpop.f32.mrf.mxu0
      %v840 = vadd.f32 %v767, %v839
      %841 = vmatmul.f32.gmra.mxu0 %v785
      %v842 = vpop.f32.mrf.mxu0
      %v843 = vadd.f32 %v771, %v842
      %844 = vmatmul.f32.gmra.mxu0 %v788
      %v845 = vpop.f32.mrf.mxu0
      %v846 = vadd.f32 %v775, %v845
      %847 = vmatmul.f32.gmra.mxu0 %v791
      %v848 = vpop.f32.mrf.mxu0
      %v849 = vadd.f32 %v779, %v848
      %850 = vdwg.mxu0
      %v851 = vmax.f32 %v811, 0.0
      %v852 = vmax.f32 %v840, 0.0
      %v853 = vmax.f32 %v814, 0.0
      %v854 = vmax.f32 %v843, 0.0
      %v855 = vmax.f32 %v817, 0.0
      %v856 = vmax.f32 %v846, 0.0
      %v857 = vmax.f32 %v820, 0.0
      %v858 = vmax.f32 %v849, 0.0
      %v859 = vld [vmem:[%s3] sm:$0x7]
      %v860 = vld [vmem:[%s4] sm:$0x7]
      %862 = vset.pattern.permute.xlu0 5
      %863 = vperm.xlu0 %862, %v860
      %v864 = vpop.permute.xlu0 %863
      %v867 = vsel %vm483, %v859, 0
      %869 = vmatpush.msra.mxu0 0.0
      %870 = vmatpush.msra.mxu0 0.0
      %871 = vmatpush.msra.mxu0 0.0
      %872 = vmatpush.msra.mxu0 0.0
      %873 = vmatpush.msra.mxu0 0.0
      %874 = vmatpush.msra.mxu0 0.0
      %875 = vmatpush.msra.mxu0 0.0
      %876 = vmatpush.msra.mxu0 0.0
      %877 = vmatpush.msra.mxu0 0.0
      %878 = vmatpush.msra.mxu0 0.0
      %879 = vmatpush.msra.mxu0 0.0
      %880 = vmatpush.msra.mxu0 0.0
      %881 = vmatpush.msra.mxu0 %v857
      %882 = vmatpush.msra.mxu0 %v855
      %883 = vmatpush.msra.mxu0 %v853
      %884 = vmatpush.msra.mxu0 %v851
      %885 = vmatmul.f32.gmra.mxu0 %v867
      %v886 = vpop.f32.mrf.mxu0
      %v887 = vadd.f32 %v864, %v886
      %888 = vdwg.mxu0
      %889 = vmatpush.msra.mxu0 0.0
      %890 = vmatpush.msra.mxu0 0.0
      %891 = vmatpush.msra.mxu0 0.0
      %892 = vmatpush.msra.mxu0 0.0
      %893 = vmatpush.msra.mxu0 0.0
      %894 = vmatpush.msra.mxu0 0.0
      %895 = vmatpush.msra.mxu0 0.0
      %896 = vmatpush.msra.mxu0 0.0
      %897 = vmatpush.msra.mxu0 0.0
      %898 = vmatpush.msra.mxu0 0.0
      %899 = vmatpush.msra.mxu0 0.0
      %900 = vmatpush.msra.mxu0 0.0
      %901 = vmatpush.msra.mxu0 %v858
      %902 = vmatpush.msra.mxu0 %v856
      %903 = vmatpush.msra.mxu0 %v854
      %904 = vmatpush.msra.mxu0 %v852
      %905 = vmatmul.f32.gmra.mxu0 %v867
      %v906 = vpop.f32.mrf.mxu0
      %v907 = vadd.f32 %v864, %v906
      %908 = vdwg.mxu0
      %v911 = vrot.slane %v907, 4
      %vm912 = vcmask 1043456
      %v913 = vsel %vm912, %v887, %v911
      %915 = vst [vmem:[%s226] sm:$0x77] %v913
      %s916 = smul.u32 2, %s16
      %p917 = scmp.lt.s32.totalorder %s916, 3
      %s918 = scalar_select %p917, %s916, 3
      %s919 = smul.addr %s918, 4
      %s920 = scalar_lea.vmem %s5, %s919
      // Predicated region
      $region41: #{_lambda_.1} parent=39 // pred_check
        %p921 = pneg %p144
      $region42: #{_lambda_.1} parent=39 // pred_check_branch
        %923 = sbr.rel (%p921) target = $region44
      $region43: #{_lambda_.1} parent=39 // pred_region
        %s924 = smul.u32 2, %s16
      $region44: #{_lambda_.1} parent=39 // pred_fallthru
        _
    $region40: #{_lambda_.1} parent=5 // pred_fallthru
      _
    %p925 = scmp.le.s32.totalorder 2, %s11
    // Predicated region
    $region45: #{_lambda_.1} parent=5 // pred_check
      %p926 = pneg %p925
    $region46: #{_lambda_.1} parent=5 // pred_check_branch
      %928 = sbr.rel (%p926) target = $region48
    $region47: #{_lambda_.1} parent=5 // pred_region
      %s929 = ssub.s32 %s11, 2
      // Predicated region
      $region49: #{_lambda_.1} parent=47 // pred_check
        %p930 = pneg %p150
      $region50: #{_lambda_.1} parent=47 // pred_check_branch
        %932 = sbr.rel (%p930) target = $region52
      $region51: #{_lambda_.1} parent=47 // pred_region
        %s933 = smul.u32 2, %s17
        %p934 = scmp.lt.s32.totalorder %s933, 3
        %s935 = scalar_select %p934, %s933, 3
        %s936 = smul.addr %s935, 4
        %s937 = scalar_lea.vmem %s5, %s936
      $region52: #{_lambda_.1} parent=47 // pred_fallthru
        _
    $region48: #{_lambda_.1} parent=5 // pred_fallthru
      _
  $region6: #{_lambda_.1} parent=0 // loop_footer
    %s15 = sadd.s32 1, %s11
  $region7: #{_lambda_.1} parent=0 // loop_footer_branch
    %10 = sbr.rel target = $region3
  $region8: #{_lambda_.1} parent=0 // loop_exit
    _

</llo_original>
